<compile_context>
chip_gen: v6e
topology: v6e:2x2x1
jax: 0.10.0
libtpu: 0.0.40
codegen_flags: <defaults>
</compile_context>

<pallas_src>
import functools
import math

import jax
import jax.numpy as jnp
from jax.experimental import pallas as pl
from jax.experimental.pallas import tpu as pltpu


def _round_up(x, m):
    return ((x + m - 1) // m) * m


def _cdiv(a, b):
    return -(-a // b)


@functools.lru_cache(maxsize=None)
def _vmem_budget_bytes():
    """Per-generation VMEM budget (v7x has 64 MiB/TC vs 128 MiB on v5e/v6e)."""
    try:
        cap = pltpu.get_tpu_info().vmem_capacity_bytes
    except Exception:
        cap = 128 * 2 ** 20
    # ~45% of physical, capped at 48 MiB: 128 MiB -> 48 MiB, 64 MiB (v7x) -> ~28 MiB.
    return int(min(cap * 45 // 100, 48 * 2 ** 20))


def _linear_relu_kernel(x_ref, w_ref, b_ref, o_ref):
    # x_ref: (tm, tk), w_ref: (tk, tn) [weight pre-transposed to (L, O)],
    # b_ref: (1, tn) f32, o_ref: (tm, tn) f32 -- accumulated in-place across k.
    k = pl.program_id(2)

    @pl.when(k == 0)
    def _():
        o_ref[...] = jnp.zeros_like(o_ref)

    # Canonical (M,K) x (K,N) contraction on the MXU, f32 accumulation.
    o_ref[...] += jnp.dot(x_ref[...], w_ref[...],
                          preferred_element_type=jnp.float32)

    @pl.when(k == pl.num_programs(2) - 1)
    def _():
        o_ref[...] = jnp.maximum(o_ref[...] + b_ref[...], 0.0)


@functools.partial(
    jax.jit, static_argnames=("tm", "tn", "tk", "use_bf16", "force_pallas"))
def parallel_linear_layer(x, weight, bias, *, use_bf16=True,
                          tm=256, tn=512, tk=1024, force_pallas=False):
    """Pallas equivalent of ParallelLinearLayer.forward.

    x:      (S, N, L) float32
    weight: (O, L)    float32   (PyTorch nn.Linear weight layout)
    bias:   (O,)      float32
    returns (S, N, O) float32
    """
    S, N, L = x.shape
    O = weight.shape[0]
    M = S * N

    x2d = x.reshape(M, L)

    # Latency-bound toy shapes: a pallas_call launch + padding is pure overhead;
    # let XLA fuse matmul + bias + relu instead (bypassed when force_pallas=True).
    if not force_pallas and (M < 128 and O <= 256 and L <= 256):
        y = jnp.maximum(x2d @ weight.T + bias, 0.0)
        return y.reshape(S, N, O)

    in_bytes = 2 if use_bf16 else 4
    m_align = 16 if use_bf16 else 8        # bf16 packs 16 rows per vreg sublane

    # ---- candidate tiles --------------------------------------------------
    tm_eff = min(tm, _round_up(M, m_align))
    tn_eff = min(tn, _round_up(O, 128))    # lane-dense output tile
    tk_eff = L if L <= tk else tk

    # ---- fit the double-buffered working set into the per-gen VMEM budget --
    budget = _vmem_budget_bytes()

    def _needed(tm_, tn_, tk_):
        return (2 * (tm_ * tk_ + tk_ * tn_) * in_bytes   # X / W double-buffered
                + 2 * tn_ * 4                            # bias
                + 2 * tm_ * tn_ * 4)                     # f32 output block (acc)

    while _needed(tm_eff, tn_eff, tk_eff) > budget:
        if tk_eff > 512 and tk_eff % 256 == 0:
            tk_eff //= 2
        elif tn_eff > 128 and tn_eff % 256 == 0:
            tn_eff //= 2
        elif tm_eff > 2 * m_align:
            tm_eff //= 2
        else:
            break

    # ---- padded extents (only the contraction axis needs zero padding) -----
    o_pad = _round_up(O, tn_eff)
    l_pad = L if tk_eff == L else _round_up(L, tk_eff)

    grid_m = _cdiv(M, tm_eff)              # ragged last M block is masked
    grid_n = o_pad // tn_eff

    # v7x megacore: expose >=2 parallel output blocks if the grid would collapse.
    if grid_m == 1 and grid_n == 1 and o_pad >= 256 and o_pad % 256 == 0:
        tn_eff = o_pad // 2
        grid_n = 2

    grid = (grid_m, grid_n, l_pad // tk_eff)

    # ---- operand prep -------------------------------------------------------
    if l_pad != L:                          # zero pad K (numerically inert)
        x2d = jnp.pad(x2d, ((0, 0), (0, l_pad - L)))
    w = weight.T                            # (L, O): W lane dim == output lane dim
    if (l_pad, o_pad) != (L, O):
        w = jnp.pad(w, ((0, l_pad - L), (0, o_pad - O)))
    b2d = bias.reshape(1, O)
    if o_pad != O:
        b2d = jnp.pad(b2d, ((0, 0), (0, o_pad - O)))

    if use_bf16:                            # MXU-native inputs on v5e/v6e/v7x
        x2d = x2d.astype(jnp.bfloat16)
        w = w.astype(jnp.bfloat16)

    needed = _needed(tm_eff, tn_eff, tk_eff)
    vmem_limit = int(min(max(2 * needed, 16 * 2 ** 20), budget))

    y2d = pl.pallas_call(
        _linear_relu_kernel,
        out_shape=jax.ShapeDtypeStruct((M, o_pad), jnp.float32),
        grid_spec=pltpu.PrefetchScalarGridSpec(
            num_scalar_prefetch=0,
            grid=grid,
            in_specs=[
                pl.BlockSpec((tm_eff, tk_eff), lambda i, j, k: (i, k)),   # X
                pl.BlockSpec((tk_eff, tn_eff), lambda i, j, k: (k, j)),   # W.T
                pl.BlockSpec((1, tn_eff), lambda i, j, k: (0, j)),        # bias
            ],
            out_specs=pl.BlockSpec((tm_eff, tn_eff), lambda i, j, k: (i, j)),
        ),
        compiler_params=pltpu.CompilerParams(
            dimension_semantics=("parallel", "parallel", "arbitrary"),
            vmem_limit_bytes=vmem_limit,
        ),
    )(x2d, w, b2d)

    return y2d[:, :O].reshape(S, N, O)


if __name__ == "__main__":
    # Small shapes implied by the forward: S=8 (sequence), N=2 (batch), L=O=32.
    S, N, L, O = 8, 2, 32, 32

    key = jax.random.PRNGKey(0)
    kx, kw, kb = jax.random.split(key, 3)

    x = jax.random.normal(kx, (S, N, L), dtype=jnp.float32)
    bound = 1.0 / math.sqrt(L)              # nn.Linear default init range
    weight = jax.random.uniform(kw, (O, L), minval=-bound, maxval=bound,
                                dtype=jnp.float32)
    bias = jax.random.uniform(kb, (O,), minval=-bound, maxval=bound,
                              dtype=jnp.float32)

    y_ref = jnp.maximum(x.reshape(-1, L) @ weight.T + bias, 0.0).reshape(S, N, O)

    # Exercise the Pallas kernel on both paths (force past the tiny-shape fallback).
    y_bf16 = parallel_linear_layer(x, weight, bias, force_pallas=True)
    jax.block_until_ready(y_bf16)
    y_f32 = parallel_linear_layer(x, weight, bias, use_bf16=False,
                                  force_pallas=True)
    jax.block_until_ready(y_f32)

    assert y_bf16.shape == (S, N, O)
    assert jnp.allclose(y_f32, y_ref, atol=1e-5, rtol=1e-5)       # exact path
    assert jnp.allclose(y_bf16, y_ref, atol=2e-2, rtol=2e-2)      # bf16 inputs

    print("KERNEL_OK")
</pallas_src>

<mosaic_0001>
module attributes {stable_mosaic.version = 11 : i64} {
  func.func @_linear_relu_kernel(%arg0: i32, %arg1: i32, %arg2: i32, %arg3: memref<16x32xbf16, #tpu.memory_space<vmem>>, %arg4: memref<32x128xbf16, #tpu.memory_space<vmem>>, %arg5: memref<1x128xf32, #tpu.memory_space<vmem>>, %arg6: memref<16x128xf32, #tpu.memory_space<vmem>>) attributes {dimension_semantics = [#tpu.dimension_semantics<parallel>, #tpu.dimension_semantics<parallel>, #tpu.dimension_semantics<arbitrary>], iteration_bounds = array<i64: 1, 1, 1>, scalar_prefetch = 0 : i64, scratch_operands = 0 : i64, tpu.core_type = #tpu.core_type<tc>, window_params = [{transform_indices = @transform_0, window_bounds = array<i64: 16, 32>}, {transform_indices = @transform_1, window_bounds = array<i64: 32, 128>}, {transform_indices = @transform_2, window_bounds = array<i64: 1, 128>}, {transform_indices = @transform_3, window_bounds = array<i64: 16, 128>}]} {
    %c0_i32 = arith.constant 0 : i32
    %0 = arith.cmpi eq, %arg2, %c0_i32 : i32
    %1 = arith.extui %0 : i1 to i32
    %c0_i32_0 = arith.constant 0 : i32
    %2 = arith.cmpi ne, %1, %c0_i32_0 : i32
    scf.if %2 {
      %cst_10 = arith.constant 0.000000e+00 : f32
      %12 = vector.broadcast %cst_10 : f32 to vector<16x128xf32>
      %c0_11 = arith.constant 0 : index
      %c0_12 = arith.constant 0 : index
      %13 = vector.load %arg6[%c0_11, %c0_12] : memref<16x128xf32, #tpu.memory_space<vmem>>, vector<16x128xf32>
      tpu.vector_store %arg6[%c0_11, %c0_12], %12 {strides = array<i32>} : memref<16x128xf32, #tpu.memory_space<vmem>>, vector<16x128xf32>,
    } else {
    }
    %c0 = arith.constant 0 : index
    %c0_1 = arith.constant 0 : index
    %3 = vector.load %arg6[%c0, %c0_1] : memref<16x128xf32, #tpu.memory_space<vmem>>, vector<16x128xf32>
    %c0_2 = arith.constant 0 : index
    %c0_3 = arith.constant 0 : index
    %4 = vector.load %arg3[%c0_2, %c0_3] : memref<16x32xbf16, #tpu.memory_space<vmem>>, vector<16x32xbf16>
    %c0_4 = arith.constant 0 : index
    %c0_5 = arith.constant 0 : index
    %5 = vector.load %arg4[%c0_4, %c0_5] : memref<32x128xbf16, #tpu.memory_space<vmem>>, vector<32x128xbf16>
    %cst = arith.constant dense<0.000000e+00> : vector<16x128xf32>
    %6 = tpu.matmul %4, %5, %cst {dimension_numbers = #tpu.dot_dimension_numbers<[1], [0], [0], [1], [0, 0, 1, 1], [], []>} : vector<16x32xbf16>, vector<32x128xbf16>, vector<16x128xf32> -> vector<16x128xf32>
    %7 = arith.addf %3, %6 : vector<16x128xf32>
    %c0_6 = arith.constant 0 : index
    %c0_7 = arith.constant 0 : index
    %8 = vector.load %arg6[%c0_6, %c0_7] : memref<16x128xf32, #tpu.memory_space<vmem>>, vector<16x128xf32>
    tpu.vector_store %arg6[%c0_6, %c0_7], %7 {strides = array<i32>} : memref<16x128xf32, #tpu.memory_space<vmem>>, vector<16x128xf32>,
    %c0_i32_8 = arith.constant 0 : i32
    %9 = arith.cmpi eq, %arg2, %c0_i32_8 : i32
    %10 = arith.extui %9 : i1 to i32
    %c0_i32_9 = arith.constant 0 : i32
    %11 = arith.cmpi ne, %10, %c0_i32_9 : i32
    scf.if %11 {
      %c0_10 = arith.constant 0 : index
      %c0_11 = arith.constant 0 : index
      %12 = vector.load %arg6[%c0_10, %c0_11] : memref<16x128xf32, #tpu.memory_space<vmem>>, vector<16x128xf32>
      %c0_12 = arith.constant 0 : index
      %c0_13 = arith.constant 0 : index
      %13 = vector.load %arg5[%c0_12, %c0_13] : memref<1x128xf32, #tpu.memory_space<vmem>>, vector<1x128xf32>
      %14 = vector.broadcast %13 : vector<1x128xf32> to vector<16x128xf32>
      %15 = arith.addf %12, %14 : vector<16x128xf32>
      %cst_14 = arith.constant 0.000000e+00 : f32
      %16 = vector.broadcast %cst_14 : f32 to vector<16x128xf32>
      %17 = arith.maximumf %15, %16 : vector<16x128xf32>
      %c0_15 = arith.constant 0 : index
      %c0_16 = arith.constant 0 : index
      %18 = vector.load %arg6[%c0_15, %c0_16] : memref<16x128xf32, #tpu.memory_space<vmem>>, vector<16x128xf32>
      tpu.vector_store %arg6[%c0_15, %c0_16], %17 {strides = array<i32>} : memref<16x128xf32, #tpu.memory_space<vmem>>, vector<16x128xf32>,
    } else {
    }
    return
  }
  func.func @transform_0(%arg0: i32, %arg1: i32, %arg2: i32) -> (i32, i32) {
    %c0_i32 = arith.constant 0 : i32
    return %arg0, %arg2 : i32, i32
  }
  func.func @transform_1(%arg0: i32, %arg1: i32, %arg2: i32) -> (i32, i32) {
    %c0_i32 = arith.constant 0 : i32
    return %arg2, %arg1 : i32, i32
  }
  func.func @transform_2(%arg0: i32, %arg1: i32, %arg2: i32) -> (i32, i32) {
    %c0_i32 = arith.constant 0 : i32
    %c0_i32_0 = arith.constant 0 : i32
    return %c0_i32, %arg1 : i32, i32
  }
  func.func @transform_3(%arg0: i32, %arg1: i32, %arg2: i32) -> (i32, i32) {
    %c0_i32 = arith.constant 0 : i32
    return %arg0, %arg1 : i32, i32
  }
}

</mosaic_0001>

<llo_original>
// kernel: parallel_linear_layer.1
$region0: #{parallel_linear_layer.1}
  #allocation0 [shape = 'u32[]', space=smem, size = 0x4, offset = 0x4, fixed_abs, tag = 'smem constant byte address 0x4 - core index']
  #allocation1 [shape = 'u32[144,128]{1,0:T(1,128)}', space=vmem, size = 0x12000, scoped, tag = 'internal scratch']
  %s0 = inlined_call_operand.vmem [shape: bf16[16,32], index: 0, kind: input, shape index: {}]
  %s1 = inlined_call_operand.vmem [shape: bf16[32,128], index: 1, kind: input, shape index: {}]
  %s2 = inlined_call_operand.vmem [shape: f32[1,128], index: 2, kind: input, shape index: {}]
  %s3 = inlined_call_operand.hbm [shape: f32[16,128], index: 3, kind: output, shape index: {}]
  %s4 = sld [smem:[#allocation0]]
  $region30: #{parallel_linear_layer.1} parent=0
    _
  %s6 = ssub.s32 1, %s4
  %s7 = scalar_select 0, %s6, %s4
  $region1: #{parallel_linear_layer.1} parent=0
    #allocation2 [shape = 'u8[8192]{0}', space=vmem, size = 0x2000, scoped, tag = 'output window, operand 0, single buffered']
    #allocation3 [shape = 's32[1]{0}', space=sflag, size = 0x4, scoped, tag = 'scoped memory for parallel_linear_layer.1']
    %8 = vsyncpa [#allocation3], 0
    // Predicated region
    $region2: #{parallel_linear_layer.1} parent=1 // pred_check
      _
    $region3: #{parallel_linear_layer.1} parent=1 // pred_check_branch
      %10 = sbr.rel (0) target = $region5
    $region4: #{parallel_linear_layer.1} parent=1 // pred_region
      _
    $region5: #{parallel_linear_layer.1} parent=1 // pred_fallthru
      _
    // Predicated region
    $region6: #{parallel_linear_layer.1} parent=1 // pred_check
      _
    $region7: #{parallel_linear_layer.1} parent=1 // pred_check_branch
      %12 = sbr.rel (0) target = $region9
    $region8: #{parallel_linear_layer.1} parent=1 // pred_region
      _
    $region9: #{parallel_linear_layer.1} parent=1 // pred_fallthru
      _
    // Predicated region
    $region10: #{parallel_linear_layer.1} parent=1 // pred_check
      _
    $region11: #{parallel_linear_layer.1} parent=1 // pred_check_branch
      %14 = sbr.rel (0) target = $region13
    $region12: #{parallel_linear_layer.1} parent=1 // pred_region
      _
    $region13: #{parallel_linear_layer.1} parent=1 // pred_fallthru
      _
    %p16 = scmp.eq.s32.totalorder 0, 0
    // Predicated region
    $region14: #{parallel_linear_layer.1} parent=1 // pred_check
      %p17 = pneg %p16
    $region15: #{parallel_linear_layer.1} parent=1 // pred_check_branch
      %19 = sbr.rel (%p17) target = $region17
    $region16: #{parallel_linear_layer.1} parent=1 // pred_region
      %20 = vst [vmem:[#allocation2] sm:$0xff] 0.0
      %21 = vst [vmem:[#allocation2 + $0x8] sm:$0xff] 0.0
    $region17: #{parallel_linear_layer.1} parent=1 // pred_fallthru
      _
    %v22 = vld [vmem:[#allocation2] sm:$0xff]
    %v23 = vld [vmem:[#allocation2 + $0x8] sm:$0xff]
    %v24 = vld [vmem:[%s0] sm:$0xf]
    %v25 = vld [vmem:[%s0 + $0x4] sm:$0xf]
    %v26 = vld [vmem:[%s1] sm:$0xf]
    %v27 = vld [vmem:[%s1 + $0x4] sm:$0xf]
    %v28 = vld [vmem:[%s1 + $0x8] sm:$0xf]
    %v29 = vld [vmem:[%s1 + $0xc] sm:$0xf]
    %v32 = vunpack.c.l.b16 %v24
    %v33 = vunpack.c.l.b16 %v25
    %v34 = vpack.c.b16 %v33, %v32
    %v39 = vunpack.c.l.b16 %v26
    %v40 = vunpack.c.l.b16 %v27
    %v41 = vunpack.c.l.b16 %v28
    %v42 = vunpack.c.l.b16 %v29
    %v43 = vpack.c.b16 %v40, %v39
    %v44 = vpack.c.b16 %v42, %v41
    %vm47 = vcmask 261120
    %v49 = vsel %vm47, %v34, 0
    %51 = vmatprep.subr.bf16.mxu0 0
    %52 = vmatpush1.bf16.msra.mxu0 0
    %53 = vmatprep.subr.bf16.mxu0 0
    %54 = vmatpush1.bf16.msra.mxu0 0
    %55 = vmatprep.subr.bf16.mxu0 0
    %56 = vmatpush1.bf16.msra.mxu0 0
    %57 = vmatprep.subr.bf16.mxu0 0
    %58 = vmatpush1.bf16.msra.mxu0 0
    %59 = vmatprep.subr.bf16.mxu0 0
    %60 = vmatpush1.bf16.msra.mxu0 0
    %61 = vmatprep.subr.bf16.mxu0 0
    %62 = vmatpush1.bf16.msra.mxu0 0
    %63 = vmatprep.subr.bf16.mxu0 0
    %64 = vmatpush1.bf16.msra.mxu0 %v44
    %65 = vmatprep.subr.bf16.mxu0 0
    %66 = vmatpush1.bf16.msra.mxu0 %v43
    %67 = vmatprep.subr.bf16.mxu0 0
    %68 = vmatpush2.bf16.msra.mxu0 0
    %69 = vmatprep.subr.bf16.mxu0 0
    %70 = vmatpush2.bf16.msra.mxu0 0
    %71 = vmatprep.subr.bf16.mxu0 0
    %72 = vmatpush2.bf16.msra.mxu0 0
    %73 = vmatprep.subr.bf16.mxu0 0
    %74 = vmatpush2.bf16.msra.mxu0 0
    %75 = vmatprep.subr.bf16.mxu0 0
    %76 = vmatpush2.bf16.msra.mxu0 0
    %77 = vmatprep.subr.bf16.mxu0 0
    %78 = vmatpush2.bf16.msra.mxu0 0
    %79 = vmatprep.subr.bf16.mxu0 0
    %80 = vmatpush2.bf16.msra.mxu0 0
    %81 = vmatprep.subr.bf16.mxu0 0
    %82 = vmatpush2.bf16.msra.mxu0 0
    %83 = vmatprep.mubr.bf16.mxu0 0
    %84 = vmatmul.mubr.bf16.gmra.mxu0 %v49
    %v85 = vpop.f32.mrf.mxu0
    %v86 = vadd.f32 0.0, %v85
    %v87 = vpop.f32.mrf.mxu0
    %v88 = vpop.f32.mrf.mxu0
    %v89 = vadd.f32 0.0, %v88
    %v90 = vpop.f32.mrf.mxu0
    %91 = vdwg.mxu0
    %v92 = vadd.f32 %v22, %v86
    %v93 = vadd.f32 %v23, %v89
    %94 = vst [vmem:[#allocation2] sm:$0xff] %v92
    %95 = vst [vmem:[#allocation2 + $0x8] sm:$0xff] %v93
    // Predicated region
    $region18: #{parallel_linear_layer.1} parent=1 // pred_check
      %p96 = pneg %p16
    $region19: #{parallel_linear_layer.1} parent=1 // pred_check_branch
      %98 = sbr.rel (%p96) target = $region21
    $region20: #{parallel_linear_layer.1} parent=1 // pred_region
      %v99 = vld [vmem:[#allocation2] sm:$0xff]
      %v100 = vld [vmem:[#allocation2 + $0x8] sm:$0xff]
      %v101 = vld [vmem:[%s2] sm:$0x1]
      %v103 = vlaneseq
      %v104 = vshrl.u32 %v103, 7
      %v105 = vsub.s32 0, %v104
      %v106 = vrot.slane %v101, %v105
      %v108 = vadd.f32 %v99, %v106
      %v109 = vadd.f32 %v100, %v106
      %v110 = vmax.f32 %v108, 0.0
      %v111 = vmax.f32 %v109, 0.0
      %112 = vst [vmem:[#allocation2] sm:$0xff] %v110
      %113 = vst [vmem:[#allocation2 + $0x8] sm:$0xff] %v111
    $region21: #{parallel_linear_layer.1} parent=1 // pred_fallthru
      _
    // Predicated region
    $region22: #{parallel_linear_layer.1} parent=1 // pred_check
      _
    $region23: #{parallel_linear_layer.1} parent=1 // pred_check_branch
      %115 = sbr.rel (0) target = $region25
    $region24: #{parallel_linear_layer.1} parent=1 // pred_region
      %s117 = ssub.s32 256, 256
      %118 = vsyncadd [#allocation3], %s117
      %s119 = sshll.u32 [#allocation2], 4
      %s120 = int_to_ptr.vmem [resolvable:$true] %s119
      %125 = dma.vmem_to_hbm [thread:$0]  %s120, 256, %s3, [#allocation3], 128, 128, 8
    $region25: #{parallel_linear_layer.1} parent=1 // pred_fallthru
      _
    // Predicated region
    $region26: #{parallel_linear_layer.1} parent=1 // pred_check
      _
    $region27: #{parallel_linear_layer.1} parent=1 // pred_check_branch
      %127 = sbr.rel (0) target = $region29
    $region28: #{parallel_linear_layer.1} parent=1 // pred_region
      %128 = dma.done [#allocation3], 256
    $region29: #{parallel_linear_layer.1} parent=1 // pred_fallthru
      _
    %129 = vsyncpa [#allocation3], 1

</llo_original>
